<compile_context>
chip_gen: v7x
topology: tpu7x:2x2x1
jax: 0.10.0
libtpu: 0.0.40
codegen_flags: <defaults>
</compile_context>

<pallas_src>
import functools

import jax
import jax.numpy as jnp
from jax import lax
from jax.experimental import pallas as pl
from jax.experimental.pallas import tpu as pltpu


# Whole-slab-in-VMEM spec (no grid).  Fine at 64x128 f32 (32 KiB); if H, W
# grow, mind the v7x 64 MiB VMEM ceiling (raise vmem_limit_bytes or tile W in
# lane-dense multiples of 128 with a 1-row/1-col halo).
_VMEM_SPEC = pl.BlockSpec(memory_space=pltpu.MemorySpace.VMEM)


# ----------------------------- stencil helpers ------------------------------
def _shift_terms(x, h, w):
    """Roll-based 4-neighbour terms (wrap-around handled by the callers)."""
    up    = pltpu.roll(x, 1,     0)   # up[i, j]    == x[i-1, j]  (row 0 wraps)
    down  = pltpu.roll(x, h - 1, 0)   # down[i, j]  == x[i+1, j]  (row h-1 wraps)
    left  = pltpu.roll(x, 1,     1)   # left[i, j]  == x[i, j-1]  (col 0 wraps)
    right = pltpu.roll(x, w - 1, 1)   # right[i, j] == x[i, j+1]  (col w-1 wraps)
    return up, down, left, right


def _run_steps(x, step, nt, unroll):
    """nt applications of `step`, unrolled by `unroll` inside a fori_loop."""
    unroll = max(1, min(int(unroll), nt)) if nt > 0 else 1
    n_chunks, rem = divmod(nt, unroll)

    def body(_, xc):
        for _ in range(unroll):          # unrolled: lets the LLO scheduler
            xc = step(xc)                # interleave XLU rolls of iter k+1
        return xc                        # under the VPU adds/muls of iter k

    if n_chunks > 0:
        x = lax.fori_loop(0, n_chunks, body, x)
    for _ in range(rem):
        x = step(x)
    return x


def _edge_masks_xla(h, w, dtype):
    """0/1 masks (built in XLA, outside the kernel) zeroing the row/column of
    each roll term that is contaminated by wrap-around."""
    ones = jnp.ones((h, w), dtype)
    em_u = ones.at[0, :].set(0)
    em_d = ones.at[-1, :].set(0)
    em_l = ones.at[:, 0].set(0)
    em_r = ones.at[:, -1].set(0)
    return em_u, em_d, em_l, em_r


# ----------------------------- Pallas kernels ------------------------------
def _jacobi_ring0_kernel(x_ref, m4_ref, o_ref, *, nt, unroll):
    """nt iters of x <- conv2d(x, cross, padding=1) * mask, mask ring == 0.

    m4 = 0.25 * mask (precomputed in XLA).  Wrap-around contamination from
    the rolls only ever lands on the outer ring of the conv output, which the
    ring-zero mask wipes — so the hot loop is 3 adds + 1 mul per vreg.
    """
    h, w = x_ref.shape
    m4 = m4_ref[...]

    def step(x):
        up, down, left, right = _shift_terms(x, h, w)
        return (up + down + left + right) * m4

    o_ref[...] = _run_steps(x_ref[...], step, nt, unroll)


def _jacobi_generic_kernel(x_ref, mu4_ref, md4_ref, ml4_ref, mr4_ref, o_ref,
                           *, nt, unroll):
    """Generic fallback for arbitrary masks: the boundary handling is folded
    into four loop-invariant per-direction masks (precomputed in XLA)."""
    h, w = x_ref.shape
    mu4, md4, ml4, mr4 = mu4_ref[...], md4_ref[...], ml4_ref[...], mr4_ref[...]

    # TODO(synk): on v5e this 4-mul + 3-add form is VPU-bound (~14 cyc/step vs
    # the ~11 cyc XLU bound); only relevant when the generic path is hot.
    def step(x):
        up, down, left, right = _shift_terms(x, h, w)
        return up * mu4 + down * md4 + left * ml4 + right * mr4

    o_ref[...] = _run_steps(x_ref[...], step, nt, unroll)


def _weighted_cross_conv_kernel(x_ref, w_ref, eu4_ref, ed4_ref, el4_ref,
                                er4_ref, o_ref):
    """F.conv2d(x * w, cross_kernel, padding=1): weight-mul fused into the
    conv; 0.25 and zero-padding folded into the precomputed edge masks."""
    h, w = x_ref.shape
    xw = x_ref[...] * w_ref[...]
    up, down, left, right = _shift_terms(xw, h, w)
    o_ref[...] = (up * eu4_ref[...] + down * ed4_ref[...]
                  + left * el4_ref[...] + right * er4_ref[...])


# ------------------------------ Pallas wrappers ------------------------------
def jacobi_2d(x2d, mask2d, nt, *, ring_zero=False, unroll=4):
    """nt Jacobi smoothing steps on a 2-D slab.  `unroll` is sweepable
    (2/4/8); pick the largest value that does not spill vregs."""
    h, w = x2d.shape
    m4 = mask2d * 0.25                       # exact (power-of-2 scale)
    if ring_zero:
        kernel = functools.partial(_jacobi_ring0_kernel, nt=nt, unroll=unroll)
        args = (x2d, m4)
    else:
        em_u, em_d, em_l, em_r = _edge_masks_xla(h, w, x2d.dtype)
        kernel = functools.partial(_jacobi_generic_kernel, nt=nt, unroll=unroll)
        args = (x2d, em_u * m4, em_d * m4, em_l * m4, em_r * m4)
    return pl.pallas_call(
        kernel,
        out_shape=jax.ShapeDtypeStruct((h, w), x2d.dtype),
        in_specs=[_VMEM_SPEC] * len(args),
        out_specs=_VMEM_SPEC,
    )(*args)


def weighted_cross_conv_2d(x2d, w2d):
    """F.conv2d(x2d * w2d, cross_kernel, padding=1)."""
    h, w = x2d.shape
    em_u, em_d, em_l, em_r = _edge_masks_xla(h, w, x2d.dtype)
    args = (x2d, w2d, 0.25 * em_u, 0.25 * em_d, 0.25 * em_l, 0.25 * em_r)
    return pl.pallas_call(
        _weighted_cross_conv_kernel,
        out_shape=jax.ShapeDtypeStruct((h, w), x2d.dtype),
        in_specs=[_VMEM_SPEC] * len(args),
        out_specs=_VMEM_SPEC,
    )(*args)


# ------------------------------ JAX glue ops --------------------------------
def jacobi(x, mask, nt, *, ring_zero=False):            # (1,1,H,W) wrappers
    return jacobi_2d(x[0, 0], mask[0, 0], nt, ring_zero=ring_zero)[None, None]


def weighted_cross_conv(x, weight):
    return weighted_cross_conv_2d(x[0, 0], weight[0, 0])[None, None]


def restriction(x):                                      # nn.AvgPool2d(2)
    n, c, h, w = x.shape
    return x.reshape(n, c, h // 2, 2, w // 2, 2).mean(axis=(3, 5))


def interpolate(x, target_size):
    # TODO(synk): bilinear prolongation (F.interpolate, align_corners=False)
    # stays plain-JAX glue; in the reference its result never feeds the output.
    n, c, _, _ = x.shape
    th, tw = target_size
    return jax.image.resize(x, (n, c, th, tw), method="bilinear")


@functools.partial(jax.jit,
                   static_argnames=("nt", "num_levels", "ring_zero_fine",
                                    "ring_zero_coarse", "run_dead_passes"))
def jacobi_machine_forward(X, Y, masks, *, nt, num_levels,
                           ring_zero_fine=False, ring_zero_coarse=False,
                           run_dead_passes=False):
    """Mirrors JacobiMachine.forward; masks == [Mask1, ..., Mask10].

    The returned value equals jacobi(gaussian(X, Y), Mask1, nt), exactly as in
    the reference.  The down/up multigrid passes and the coarse-grid Jacobi of
    the reference never feed the returned value; they are gated behind
    `run_dead_passes` (default False) instead of relying on XLA DCE.
    """
    f32 = jnp.float32
    x = jnp.exp(-50.0 * ((X - 0.5) ** 2 + (Y - 0.5) ** 2)).astype(f32)
    x = x[None, None, :, :]                              # (1, 1, H, W)

    if run_dead_passes:
        grids = [x]
        for level in range(1, num_levels):               # down / restriction
            m = masks[level - 1]
            # linearity fusion of the two reference convs (FP-reassociation
            # only; this path never reaches the returned value).
            weight = (m > 0).astype(f32) + (1.0 - m)
            residual = weighted_cross_conv(grids[level - 1], weight)
            grids.append(restriction(residual))
        # coarse-grid smoothing (the reference hard-codes Mask9 == masks[8])
        grids[-1] = jacobi(grids[-1], masks[8], nt, ring_zero=ring_zero_coarse)
        for level in range(num_levels - 2, -1, -1):       # up / prolongation
            target_size = grids[level].shape[-2:]
            fine = interpolate(grids[level + 1], target_size) + grids[level]
            m = masks[level]
            weight = (m > 0).astype(f32) + (1.0 - m)
            fine = weighted_cross_conv(fine, weight)      # never written back

    # Output-relevant path: identical to the reference's returned value.
    return jacobi(x, masks[0], nt, ring_zero=ring_zero_fine)


# ------------------------ pure-JAX reference (check) ------------------------
def _ref_cross(x2d):
    h, w = x2d.shape
    xp = jnp.pad(x2d, ((1, 1), (1, 1)))
    up, down = xp[0:h, 1:w + 1], xp[2:h + 2, 1:w + 1]
    left, right = xp[1:h + 1, 0:w], xp[1:h + 1, 2:w + 2]
    return 0.25 * (up + down + left + right)


def _ref_jacobi(x2d, m2d, nt):
    return lax.fori_loop(0, nt, lambda _, x: _ref_cross(x) * m2d, x2d)


# ---------------------------------- main ------------------------------------
if __name__ == "__main__":
    H, W = 64, 128    # W = 128 -> lane-dense slabs (full vreg lane width)
    NT = 128          # JacobiMachine(nt=128, ...)
    NUM_LEVELS = 4    # JacobiMachine(..., num_levels=4)

    key = jax.random.PRNGKey(0)
    kx, ky, kw = jax.random.split(key, 3)
    X = jax.random.uniform(kx, (H, W), jnp.float32)
    Y = jax.random.uniform(ky, (H, W), jnp.float32)

    def base_mask(h, w):
        m = jnp.ones((1, 1, h, w), jnp.float32)
        m = m.at[:, :, 0, :].set(0.0).at[:, :, -1, :].set(0.0)
        m = m.at[:, :, :, 0].set(0.0).at[:, :, :, -1].set(0.0)
        return m

    # Mask1..Mask{num_levels}: boundary mask + its avg-pool restrictions.
    masks = [base_mask(H, W)]
    for _ in range(NUM_LEVELS - 1):
        masks.append(restriction(masks[-1]))
    # Mask{num_levels+1}..Mask10 (only Mask9 is read, on the coarsest grid).
    ch, cw = H // 2 ** (NUM_LEVELS - 1), W // 2 ** (NUM_LEVELS - 1)
    while len(masks) < 10:
        masks.append(base_mask(ch, cw))

    def _ring_is_zero(m):                      # concrete check, outside jit
        m2 = m[0, 0]
        return bool(jnp.all(m2[0, :] == 0) & jnp.all(m2[-1, :] == 0)
                    & jnp.all(m2[:, 0] == 0) & jnp.all(m2[:, -1] == 0))

    out = jacobi_machine_forward(
        X, Y, masks, nt=NT, num_levels=NUM_LEVELS,
        ring_zero_fine=_ring_is_zero(masks[0]),       # tied to the mask used
        ring_zero_coarse=_ring_is_zero(masks[8]),     # on each jacobi call
        run_dead_passes=False)
    out = jax.block_until_ready(out)
    assert out.shape == (1, 1, H, W) and out.dtype == jnp.float32

    # sanity check of the output-relevant path against a pure-JAX reference
    x0 = jnp.exp(-50.0 * ((X - 0.5) ** 2 + (Y - 0.5) ** 2)).astype(jnp.float32)
    ref = _ref_jacobi(x0, masks[0][0, 0], NT)
    err = float(jnp.max(jnp.abs(out[0, 0] - ref)))
    assert err < 1e-5, f"max abs error vs reference: {err}"

    # exercise the generic (ring_zero=False) fallback path, with a mask whose
    # boundary ring is NOT zero (all-ones), on a small coarse grid.
    xs = jax.random.uniform(jax.random.PRNGKey(1), (ch, cw), jnp.float32)
    ms = jnp.ones((ch, cw), jnp.float32)
    got = jax.block_until_ready(jacobi_2d(xs, ms, 8, ring_zero=False))
    err2 = float(jnp.max(jnp.abs(got - _ref_jacobi(xs, ms, 8))))
    assert err2 < 1e-5, f"fallback path max abs error vs reference: {err2}"

    # validate the weighted-cross-conv kernel (building block of the gated
    # multigrid passes) directly against the reference conv.
    wts = jax.random.uniform(kw, (H, W), jnp.float32)
    got3 = jax.block_until_ready(weighted_cross_conv_2d(x0, wts))
    err3 = float(jnp.max(jnp.abs(got3 - _ref_cross(x0 * wts))))
    assert err3 < 1e-5, f"weighted conv max abs error vs reference: {err3}"

    print("KERNEL_OK")
</pallas_src>

<mosaic_0001>
module attributes {stable_mosaic.version = 11 : i64} {
  func.func @_jacobi_ring0_kernel(%arg0: memref<64x128xf32, #tpu.memory_space<vmem>>, %arg1: memref<64x128xf32, #tpu.memory_space<vmem>>, %arg2: memref<64x128xf32, #tpu.memory_space<vmem>>) attributes {dimension_semantics = [], scalar_prefetch = 0 : i64, scratch_operands = 0 : i64, tpu.core_type = #tpu.core_type<tc>} {
    %c0 = arith.constant 0 : index
    %c0_0 = arith.constant 0 : index
    %0 = vector.load %arg1[%c0, %c0_0] : memref<64x128xf32, #tpu.memory_space<vmem>>, vector<64x128xf32>
    %c0_1 = arith.constant 0 : index
    %c0_2 = arith.constant 0 : index
    %1 = vector.load %arg0[%c0_1, %c0_2] : memref<64x128xf32, #tpu.memory_space<vmem>>, vector<64x128xf32>
    %c0_i32 = arith.constant 0 : i32
    %c32_i32 = arith.constant 32 : i32
    %2 = arith.addi %c0_i32, %c32_i32 : i32
    %c1_i32 = arith.constant 1 : i32
    %3 = scf.for %arg3 = %c0_i32 to %2 step %c1_i32 iter_args(%arg4 = %1) -> (vector<64x128xf32>)  : i32 {
      %c1_i32_5 = arith.constant 1 : i32
      %5 = tpu.dynamic_rotate %arg4 by %c1_i32_5 dim 0 : vector<64x128xf32>, i32 -> vector<64x128xf32>
      %c63_i32 = arith.constant 63 : i32
      %6 = tpu.dynamic_rotate %arg4 by %c63_i32 dim 0 : vector<64x128xf32>, i32 -> vector<64x128xf32>
      %c1_i32_6 = arith.constant 1 : i32
      %7 = tpu.dynamic_rotate %arg4 by %c1_i32_6 dim 1 : vector<64x128xf32>, i32 -> vector<64x128xf32>
      %c127_i32 = arith.constant 127 : i32
      %8 = tpu.dynamic_rotate %arg4 by %c127_i32 dim 1 : vector<64x128xf32>, i32 -> vector<64x128xf32>
      %9 = arith.addf %5, %6 : vector<64x128xf32>
      %10 = arith.addf %9, %7 : vector<64x128xf32>
      %11 = arith.addf %10, %8 : vector<64x128xf32>
      %12 = arith.mulf %11, %0 : vector<64x128xf32>
      %c1_i32_7 = arith.constant 1 : i32
      %13 = tpu.dynamic_rotate %12 by %c1_i32_7 dim 0 : vector<64x128xf32>, i32 -> vector<64x128xf32>
      %c63_i32_8 = arith.constant 63 : i32
      %14 = tpu.dynamic_rotate %12 by %c63_i32_8 dim 0 : vector<64x128xf32>, i32 -> vector<64x128xf32>
      %c1_i32_9 = arith.constant 1 : i32
      %15 = tpu.dynamic_rotate %12 by %c1_i32_9 dim 1 : vector<64x128xf32>, i32 -> vector<64x128xf32>
      %c127_i32_10 = arith.constant 127 : i32
      %16 = tpu.dynamic_rotate %12 by %c127_i32_10 dim 1 : vector<64x128xf32>, i32 -> vector<64x128xf32>
      %17 = arith.addf %13, %14 : vector<64x128xf32>
      %18 = arith.addf %17, %15 : vector<64x128xf32>
      %19 = arith.addf %18, %16 : vector<64x128xf32>
      %20 = arith.mulf %19, %0 : vector<64x128xf32>
      %c1_i32_11 = arith.constant 1 : i32
      %21 = tpu.dynamic_rotate %20 by %c1_i32_11 dim 0 : vector<64x128xf32>, i32 -> vector<64x128xf32>
      %c63_i32_12 = arith.constant 63 : i32
      %22 = tpu.dynamic_rotate %20 by %c63_i32_12 dim 0 : vector<64x128xf32>, i32 -> vector<64x128xf32>
      %c1_i32_13 = arith.constant 1 : i32
      %23 = tpu.dynamic_rotate %20 by %c1_i32_13 dim 1 : vector<64x128xf32>, i32 -> vector<64x128xf32>
      %c127_i32_14 = arith.constant 127 : i32
      %24 = tpu.dynamic_rotate %20 by %c127_i32_14 dim 1 : vector<64x128xf32>, i32 -> vector<64x128xf32>
      %25 = arith.addf %21, %22 : vector<64x128xf32>
      %26 = arith.addf %25, %23 : vector<64x128xf32>
      %27 = arith.addf %26, %24 : vector<64x128xf32>
      %28 = arith.mulf %27, %0 : vector<64x128xf32>
      %c1_i32_15 = arith.constant 1 : i32
      %29 = tpu.dynamic_rotate %28 by %c1_i32_15 dim 0 : vector<64x128xf32>, i32 -> vector<64x128xf32>
      %c63_i32_16 = arith.constant 63 : i32
      %30 = tpu.dynamic_rotate %28 by %c63_i32_16 dim 0 : vector<64x128xf32>, i32 -> vector<64x128xf32>
      %c1_i32_17 = arith.constant 1 : i32
      %31 = tpu.dynamic_rotate %28 by %c1_i32_17 dim 1 : vector<64x128xf32>, i32 -> vector<64x128xf32>
      %c127_i32_18 = arith.constant 127 : i32
      %32 = tpu.dynamic_rotate %28 by %c127_i32_18 dim 1 : vector<64x128xf32>, i32 -> vector<64x128xf32>
      %33 = arith.addf %29, %30 : vector<64x128xf32>
      %34 = arith.addf %33, %31 : vector<64x128xf32>
      %35 = arith.addf %34, %32 : vector<64x128xf32>
      %36 = arith.mulf %35, %0 : vector<64x128xf32>
      scf.yield %36 : vector<64x128xf32>
    }
    %c0_3 = arith.constant 0 : index
    %c0_4 = arith.constant 0 : index
    %4 = vector.load %arg2[%c0_3, %c0_4] : memref<64x128xf32, #tpu.memory_space<vmem>>, vector<64x128xf32>
    tpu.vector_store %arg2[%c0_3, %c0_4], %3 {strides = array<i32>} : memref<64x128xf32, #tpu.memory_space<vmem>>, vector<64x128xf32>,
    return
  }
}

</mosaic_0001>

<llo_original>
// kernel: jacobi_machine_forward.1
$region0: #{jacobi_machine_forward.1}
  #allocation0 [shape = 'u32[]', space=smem, size = 0x4, offset = 0x4, fixed_abs, tag = 'smem constant byte address 0x4 - core index']
  #allocation1 [shape = 'u32[144,128]{1,0:T(1,128)}', space=vmem, size = 0x12000, scoped, tag = 'internal scratch']
  %s0 = inlined_call_operand.vmem [shape: f32[64,128], index: 0, kind: input, shape index: {}]
  %s1 = inlined_call_operand.vmem [shape: f32[64,128], index: 1, kind: input, shape index: {}]
  %s2 = inlined_call_operand.hbm [shape: f32[64,128], index: 2, kind: output, shape index: {}]
  %s3 = sld [smem:[#allocation0]]
  $region25: #{jacobi_machine_forward.1} parent=0
    _
  %s5 = ssub.s32 1, %s3
  %s6 = scalar_select 0, %s5, %s3
  $region1: #{jacobi_machine_forward.1} parent=0
    #allocation2 [shape = 'u8[32768]{0}', space=vmem, size = 0x8000, scoped, tag = 'output window, operand 0, single buffered']
    #allocation3 [shape = 's32[1]{0}', space=sflag, size = 0x4, scoped, tag = 'scoped memory for jacobi_machine_forward.1']
    %7 = vsyncpa [#allocation3], 0
    // Predicated region
    $region2: #{jacobi_machine_forward.1} parent=1 // pred_check
      _
    $region3: #{jacobi_machine_forward.1} parent=1 // pred_check_branch
      %9 = sbr.rel (0) target = $region5
    $region4: #{jacobi_machine_forward.1} parent=1 // pred_region
      _
    $region5: #{jacobi_machine_forward.1} parent=1 // pred_fallthru
      _
    // Predicated region
    $region6: #{jacobi_machine_forward.1} parent=1 // pred_check
      _
    $region7: #{jacobi_machine_forward.1} parent=1 // pred_check_branch
      %11 = sbr.rel (0) target = $region9
    $region8: #{jacobi_machine_forward.1} parent=1 // pred_region
      _
    $region9: #{jacobi_machine_forward.1} parent=1 // pred_fallthru
      _
    %v12 = vld [vmem:[%s1] sm:$0xff]
    %v13 = vld [vmem:[%s1 + $0x8] sm:$0xff]
    %v14 = vld [vmem:[%s1 + $0x10] sm:$0xff]
    %v15 = vld [vmem:[%s1 + $0x18] sm:$0xff]
    %v16 = vld [vmem:[%s1 + $0x20] sm:$0xff]
    %v17 = vld [vmem:[%s1 + $0x28] sm:$0xff]
    %v18 = vld [vmem:[%s1 + $0x30] sm:$0xff]
    %v19 = vld [vmem:[%s1 + $0x38] sm:$0xff]
    %v20 = vld [vmem:[%s0] sm:$0xff]
    %v21 = vld [vmem:[%s0 + $0x8] sm:$0xff]
    %v22 = vld [vmem:[%s0 + $0x10] sm:$0xff]
    %v23 = vld [vmem:[%s0 + $0x18] sm:$0xff]
    %v24 = vld [vmem:[%s0 + $0x20] sm:$0xff]
    %v25 = vld [vmem:[%s0 + $0x28] sm:$0xff]
    %v26 = vld [vmem:[%s0 + $0x30] sm:$0xff]
    %v27 = vld [vmem:[%s0 + $0x38] sm:$0xff]
    loop: start=0, step=1, limit=32
    $region10: #{jacobi_machine_forward.1} parent=1 // loop_pre_header
      _
    $region11: #{jacobi_machine_forward.1} parent=1 // loop_header
      %s29 = sphi 0, %s33
      %p30 = scmp.ge.s32.totalorder %s29, 32
      %v34 = vphi %v20, %v422
      %v35 = vphi %v21, %v423
      %v36 = vphi %v22, %v424
      %v37 = vphi %v23, %v425
      %v38 = vphi %v24, %v426
      %v39 = vphi %v25, %v427
      %v40 = vphi %v26, %v428
      %v41 = vphi %v27, %v429
    $region12: #{jacobi_machine_forward.1} parent=1 // loop_header_branch
      %32 = sbr.rel (%p30) target = $region16
    $region13: #{jacobi_machine_forward.1} parent=1 // loop_body
      %v42 = vrot.slane %v34, 7
      %v43 = vrot.slane %v35, 7
      %v44 = vrot.slane %v36, 7
      %v45 = vrot.slane %v37, 7
      %v46 = vrot.slane %v38, 7
      %v47 = vrot.slane %v39, 7
      %v48 = vrot.slane %v40, 7
      %v49 = vrot.slane %v41, 7
      %v50 = vlaneseq
      %v51 = vshrl.u32 %v50, 7
      %vm52 = vcmp.lt.s32.totalorder %v51, 1
      %v53 = vsel %vm52, %v48, %v49
      %v54 = vsel %vm52, %v47, %v48
      %v55 = vsel %vm52, %v46, %v47
      %v56 = vsel %vm52, %v45, %v46
      %v57 = vsel %vm52, %v44, %v45
      %v58 = vsel %vm52, %v43, %v44
      %v59 = vsel %vm52, %v42, %v43
      %v60 = vsel %vm52, %v49, %v42
      %v61 = vrot.slane %v34, 1
      %v62 = vrot.slane %v35, 1
      %v63 = vrot.slane %v36, 1
      %v64 = vrot.slane %v37, 1
      %v65 = vrot.slane %v38, 1
      %v66 = vrot.slane %v39, 1
      %v67 = vrot.slane %v40, 1
      %v68 = vrot.slane %v41, 1
      %vm69 = vcmp.lt.s32.totalorder %v51, 7
      %v70 = vsel %vm69, %v67, %v68
      %v71 = vsel %vm69, %v66, %v67
      %v72 = vsel %vm69, %v65, %v66
      %v73 = vsel %vm69, %v64, %v65
      %v74 = vsel %vm69, %v63, %v64
      %v75 = vsel %vm69, %v62, %v63
      %v76 = vsel %vm69, %v61, %v62
      %v77 = vsel %vm69, %v68, %v61
      %78 = vrot.lane.b32.xlu0 %v34, 1
      %v79 = vpop.permute.xlu0 %78
      %80 = vrot.lane.b32.xlu0 %v35, 1
      %v81 = vpop.permute.xlu0 %80
      %82 = vrot.lane.b32.xlu0 %v36, 1
      %v83 = vpop.permute.xlu0 %82
      %84 = vrot.lane.b32.xlu0 %v37, 1
      %v85 = vpop.permute.xlu0 %84
      %86 = vrot.lane.b32.xlu0 %v38, 1
      %v87 = vpop.permute.xlu0 %86
      %88 = vrot.lane.b32.xlu0 %v39, 1
      %v89 = vpop.permute.xlu0 %88
      %90 = vrot.lane.b32.xlu0 %v40, 1
      %v91 = vpop.permute.xlu0 %90
      %92 = vrot.lane.b32.xlu0 %v41, 1
      %v93 = vpop.permute.xlu0 %92
      %94 = vrot.lane.b32.xlu0 %v34, 127
      %v95 = vpop.permute.xlu0 %94
      %96 = vrot.lane.b32.xlu0 %v35, 127
      %v97 = vpop.permute.xlu0 %96
      %98 = vrot.lane.b32.xlu0 %v36, 127
      %v99 = vpop.permute.xlu0 %98
      %100 = vrot.lane.b32.xlu0 %v37, 127
      %v101 = vpop.permute.xlu0 %100
      %102 = vrot.lane.b32.xlu0 %v38, 127
      %v103 = vpop.permute.xlu0 %102
      %104 = vrot.lane.b32.xlu0 %v39, 127
      %v105 = vpop.permute.xlu0 %104
      %106 = vrot.lane.b32.xlu0 %v40, 127
      %v107 = vpop.permute.xlu0 %106
      %108 = vrot.lane.b32.xlu0 %v41, 127
      %v109 = vpop.permute.xlu0 %108
      %v110 = vadd.f32 %v60, %v76
      %v111 = vadd.f32 %v59, %v75
      %v112 = vadd.f32 %v58, %v74
      %v113 = vadd.f32 %v57, %v73
      %v114 = vadd.f32 %v56, %v72
      %v115 = vadd.f32 %v55, %v71
      %v116 = vadd.f32 %v54, %v70
      %v117 = vadd.f32 %v53, %v77
      %v118 = vadd.f32 %v110, %v79
      %v119 = vadd.f32 %v111, %v81
      %v120 = vadd.f32 %v112, %v83
      %v121 = vadd.f32 %v113, %v85
      %v122 = vadd.f32 %v114, %v87
      %v123 = vadd.f32 %v115, %v89
      %v124 = vadd.f32 %v116, %v91
      %v125 = vadd.f32 %v117, %v93
      %v126 = vadd.f32 %v118, %v95
      %v127 = vadd.f32 %v119, %v97
      %v128 = vadd.f32 %v120, %v99
      %v129 = vadd.f32 %v121, %v101
      %v130 = vadd.f32 %v122, %v103
      %v131 = vadd.f32 %v123, %v105
      %v132 = vadd.f32 %v124, %v107
      %v133 = vadd.f32 %v125, %v109
      %v134 = vmul.f32 %v126, %v12
      %v135 = vmul.f32 %v127, %v13
      %v136 = vmul.f32 %v128, %v14
      %v137 = vmul.f32 %v129, %v15
      %v138 = vmul.f32 %v130, %v16
      %v139 = vmul.f32 %v131, %v17
      %v140 = vmul.f32 %v132, %v18
      %v141 = vmul.f32 %v133, %v19
      %v142 = vrot.slane %v134, 7
      %v143 = vrot.slane %v135, 7
      %v144 = vrot.slane %v136, 7
      %v145 = vrot.slane %v137, 7
      %v146 = vrot.slane %v138, 7
      %v147 = vrot.slane %v139, 7
      %v148 = vrot.slane %v140, 7
      %v149 = vrot.slane %v141, 7
      %v150 = vsel %vm52, %v148, %v149
      %v151 = vsel %vm52, %v147, %v148
      %v152 = vsel %vm52, %v146, %v147
      %v153 = vsel %vm52, %v145, %v146
      %v154 = vsel %vm52, %v144, %v145
      %v155 = vsel %vm52, %v143, %v144
      %v156 = vsel %vm52, %v142, %v143
      %v157 = vsel %vm52, %v149, %v142
      %v158 = vrot.slane %v134, 1
      %v159 = vrot.slane %v135, 1
      %v160 = vrot.slane %v136, 1
      %v161 = vrot.slane %v137, 1
      %v162 = vrot.slane %v138, 1
      %v163 = vrot.slane %v139, 1
      %v164 = vrot.slane %v140, 1
      %v165 = vrot.slane %v141, 1
      %v166 = vsel %vm69, %v164, %v165
      %v167 = vsel %vm69, %v163, %v164
      %v168 = vsel %vm69, %v162, %v163
      %v169 = vsel %vm69, %v161, %v162
      %v170 = vsel %vm69, %v160, %v161
      %v171 = vsel %vm69, %v159, %v160
      %v172 = vsel %vm69, %v158, %v159
      %v173 = vsel %vm69, %v165, %v158
      %174 = vrot.lane.b32.xlu0 %v134, 1
      %v175 = vpop.permute.xlu0 %174
      %176 = vrot.lane.b32.xlu0 %v135, 1
      %v177 = vpop.permute.xlu0 %176
      %178 = vrot.lane.b32.xlu0 %v136, 1
      %v179 = vpop.permute.xlu0 %178
      %180 = vrot.lane.b32.xlu0 %v137, 1
      %v181 = vpop.permute.xlu0 %180
      %182 = vrot.lane.b32.xlu0 %v138, 1
      %v183 = vpop.permute.xlu0 %182
      %184 = vrot.lane.b32.xlu0 %v139, 1
      %v185 = vpop.permute.xlu0 %184
      %186 = vrot.lane.b32.xlu0 %v140, 1
      %v187 = vpop.permute.xlu0 %186
      %188 = vrot.lane.b32.xlu0 %v141, 1
      %v189 = vpop.permute.xlu0 %188
      %190 = vrot.lane.b32.xlu0 %v134, 127
      %v191 = vpop.permute.xlu0 %190
      %192 = vrot.lane.b32.xlu0 %v135, 127
      %v193 = vpop.permute.xlu0 %192
      %194 = vrot.lane.b32.xlu0 %v136, 127
      %v195 = vpop.permute.xlu0 %194
      %196 = vrot.lane.b32.xlu0 %v137, 127
      %v197 = vpop.permute.xlu0 %196
      %198 = vrot.lane.b32.xlu0 %v138, 127
      %v199 = vpop.permute.xlu0 %198
      %200 = vrot.lane.b32.xlu0 %v139, 127
      %v201 = vpop.permute.xlu0 %200
      %202 = vrot.lane.b32.xlu0 %v140, 127
      %v203 = vpop.permute.xlu0 %202
      %204 = vrot.lane.b32.xlu0 %v141, 127
      %v205 = vpop.permute.xlu0 %204
      %v206 = vadd.f32 %v157, %v172
      %v207 = vadd.f32 %v156, %v171
      %v208 = vadd.f32 %v155, %v170
      %v209 = vadd.f32 %v154, %v169
      %v210 = vadd.f32 %v153, %v168
      %v211 = vadd.f32 %v152, %v167
      %v212 = vadd.f32 %v151, %v166
      %v213 = vadd.f32 %v150, %v173
      %v214 = vadd.f32 %v206, %v175
      %v215 = vadd.f32 %v207, %v177
      %v216 = vadd.f32 %v208, %v179
      %v217 = vadd.f32 %v209, %v181
      %v218 = vadd.f32 %v210, %v183
      %v219 = vadd.f32 %v211, %v185
      %v220 = vadd.f32 %v212, %v187
      %v221 = vadd.f32 %v213, %v189
      %v222 = vadd.f32 %v214, %v191
      %v223 = vadd.f32 %v215, %v193
      %v224 = vadd.f32 %v216, %v195
      %v225 = vadd.f32 %v217, %v197
      %v226 = vadd.f32 %v218, %v199
      %v227 = vadd.f32 %v219, %v201
      %v228 = vadd.f32 %v220, %v203
      %v229 = vadd.f32 %v221, %v205
      %v230 = vmul.f32 %v222, %v12
      %v231 = vmul.f32 %v223, %v13
      %v232 = vmul.f32 %v224, %v14
      %v233 = vmul.f32 %v225, %v15
      %v234 = vmul.f32 %v226, %v16
      %v235 = vmul.f32 %v227, %v17
      %v236 = vmul.f32 %v228, %v18
      %v237 = vmul.f32 %v229, %v19
      %v238 = vrot.slane %v230, 7
      %v239 = vrot.slane %v231, 7
      %v240 = vrot.slane %v232, 7
      %v241 = vrot.slane %v233, 7
      %v242 = vrot.slane %v234, 7
      %v243 = vrot.slane %v235, 7
      %v244 = vrot.slane %v236, 7
      %v245 = vrot.slane %v237, 7
      %v246 = vsel %vm52, %v244, %v245
      %v247 = vsel %vm52, %v243, %v244
      %v248 = vsel %vm52, %v242, %v243
      %v249 = vsel %vm52, %v241, %v242
      %v250 = vsel %vm52, %v240, %v241
      %v251 = vsel %vm52, %v239, %v240
      %v252 = vsel %vm52, %v238, %v239
      %v253 = vsel %vm52, %v245, %v238
      %v254 = vrot.slane %v230, 1
      %v255 = vrot.slane %v231, 1
      %v256 = vrot.slane %v232, 1
      %v257 = vrot.slane %v233, 1
      %v258 = vrot.slane %v234, 1
      %v259 = vrot.slane %v235, 1
      %v260 = vrot.slane %v236, 1
      %v261 = vrot.slane %v237, 1
      %v262 = vsel %vm69, %v260, %v261
      %v263 = vsel %vm69, %v259, %v260
      %v264 = vsel %vm69, %v258, %v259
      %v265 = vsel %vm69, %v257, %v258
      %v266 = vsel %vm69, %v256, %v257
      %v267 = vsel %vm69, %v255, %v256
      %v268 = vsel %vm69, %v254, %v255
      %v269 = vsel %vm69, %v261, %v254
      %270 = vrot.lane.b32.xlu0 %v230, 1
      %v271 = vpop.permute.xlu0 %270
      %272 = vrot.lane.b32.xlu0 %v231, 1
      %v273 = vpop.permute.xlu0 %272
      %274 = vrot.lane.b32.xlu0 %v232, 1
      %v275 = vpop.permute.xlu0 %274
      %276 = vrot.lane.b32.xlu0 %v233, 1
      %v277 = vpop.permute.xlu0 %276
      %278 = vrot.lane.b32.xlu0 %v234, 1
      %v279 = vpop.permute.xlu0 %278
      %280 = vrot.lane.b32.xlu0 %v235, 1
      %v281 = vpop.permute.xlu0 %280
      %282 = vrot.lane.b32.xlu0 %v236, 1
      %v283 = vpop.permute.xlu0 %282
      %284 = vrot.lane.b32.xlu0 %v237, 1
      %v285 = vpop.permute.xlu0 %284
      %286 = vrot.lane.b32.xlu0 %v230, 127
      %v287 = vpop.permute.xlu0 %286
      %288 = vrot.lane.b32.xlu0 %v231, 127
      %v289 = vpop.permute.xlu0 %288
      %290 = vrot.lane.b32.xlu0 %v232, 127
      %v291 = vpop.permute.xlu0 %290
      %292 = vrot.lane.b32.xlu0 %v233, 127
      %v293 = vpop.permute.xlu0 %292
      %294 = vrot.lane.b32.xlu0 %v234, 127
      %v295 = vpop.permute.xlu0 %294
      %296 = vrot.lane.b32.xlu0 %v235, 127
      %v297 = vpop.permute.xlu0 %296
      %298 = vrot.lane.b32.xlu0 %v236, 127
      %v299 = vpop.permute.xlu0 %298
      %300 = vrot.lane.b32.xlu0 %v237, 127
      %v301 = vpop.permute.xlu0 %300
      %v302 = vadd.f32 %v253, %v268
      %v303 = vadd.f32 %v252, %v267
      %v304 = vadd.f32 %v251, %v266
      %v305 = vadd.f32 %v250, %v265
      %v306 = vadd.f32 %v249, %v264
      %v307 = vadd.f32 %v248, %v263
      %v308 = vadd.f32 %v247, %v262
      %v309 = vadd.f32 %v246, %v269
      %v310 = vadd.f32 %v302, %v271
      %v311 = vadd.f32 %v303, %v273
      %v312 = vadd.f32 %v304, %v275
      %v313 = vadd.f32 %v305, %v277
      %v314 = vadd.f32 %v306, %v279
      %v315 = vadd.f32 %v307, %v281
      %v316 = vadd.f32 %v308, %v283
      %v317 = vadd.f32 %v309, %v285
      %v318 = vadd.f32 %v310, %v287
      %v319 = vadd.f32 %v311, %v289
      %v320 = vadd.f32 %v312, %v291
      %v321 = vadd.f32 %v313, %v293
      %v322 = vadd.f32 %v314, %v295
      %v323 = vadd.f32 %v315, %v297
      %v324 = vadd.f32 %v316, %v299
      %v325 = vadd.f32 %v317, %v301
      %v326 = vmul.f32 %v318, %v12
      %v327 = vmul.f32 %v319, %v13
      %v328 = vmul.f32 %v320, %v14
      %v329 = vmul.f32 %v321, %v15
      %v330 = vmul.f32 %v322, %v16
      %v331 = vmul.f32 %v323, %v17
      %v332 = vmul.f32 %v324, %v18
      %v333 = vmul.f32 %v325, %v19
      %v334 = vrot.slane %v326, 7
      %v335 = vrot.slane %v327, 7
      %v336 = vrot.slane %v328, 7
      %v337 = vrot.slane %v329, 7
      %v338 = vrot.slane %v330, 7
      %v339 = vrot.slane %v331, 7
      %v340 = vrot.slane %v332, 7
      %v341 = vrot.slane %v333, 7
      %v342 = vsel %vm52, %v340, %v341
      %v343 = vsel %vm52, %v339, %v340
      %v344 = vsel %vm52, %v338, %v339
      %v345 = vsel %vm52, %v337, %v338
      %v346 = vsel %vm52, %v336, %v337
      %v347 = vsel %vm52, %v335, %v336
      %v348 = vsel %vm52, %v334, %v335
      %v349 = vsel %vm52, %v341, %v334
      %v350 = vrot.slane %v326, 1
      %v351 = vrot.slane %v327, 1
      %v352 = vrot.slane %v328, 1
      %v353 = vrot.slane %v329, 1
      %v354 = vrot.slane %v330, 1
      %v355 = vrot.slane %v331, 1
      %v356 = vrot.slane %v332, 1
      %v357 = vrot.slane %v333, 1
      %v358 = vsel %vm69, %v356, %v357
      %v359 = vsel %vm69, %v355, %v356
      %v360 = vsel %vm69, %v354, %v355
      %v361 = vsel %vm69, %v353, %v354
      %v362 = vsel %vm69, %v352, %v353
      %v363 = vsel %vm69, %v351, %v352
      %v364 = vsel %vm69, %v350, %v351
      %v365 = vsel %vm69, %v357, %v350
      %366 = vrot.lane.b32.xlu0 %v326, 1
      %v367 = vpop.permute.xlu0 %366
      %368 = vrot.lane.b32.xlu0 %v327, 1
      %v369 = vpop.permute.xlu0 %368
      %370 = vrot.lane.b32.xlu0 %v328, 1
      %v371 = vpop.permute.xlu0 %370
      %372 = vrot.lane.b32.xlu0 %v329, 1
      %v373 = vpop.permute.xlu0 %372
      %374 = vrot.lane.b32.xlu0 %v330, 1
      %v375 = vpop.permute.xlu0 %374
      %376 = vrot.lane.b32.xlu0 %v331, 1
      %v377 = vpop.permute.xlu0 %376
      %378 = vrot.lane.b32.xlu0 %v332, 1
      %v379 = vpop.permute.xlu0 %378
      %380 = vrot.lane.b32.xlu0 %v333, 1
      %v381 = vpop.permute.xlu0 %380
      %382 = vrot.lane.b32.xlu0 %v326, 127
      %v383 = vpop.permute.xlu0 %382
      %384 = vrot.lane.b32.xlu0 %v327, 127
      %v385 = vpop.permute.xlu0 %384
      %386 = vrot.lane.b32.xlu0 %v328, 127
      %v387 = vpop.permute.xlu0 %386
      %388 = vrot.lane.b32.xlu0 %v329, 127
      %v389 = vpop.permute.xlu0 %388
      %390 = vrot.lane.b32.xlu0 %v330, 127
      %v391 = vpop.permute.xlu0 %390
      %392 = vrot.lane.b32.xlu0 %v331, 127
      %v393 = vpop.permute.xlu0 %392
      %394 = vrot.lane.b32.xlu0 %v332, 127
      %v395 = vpop.permute.xlu0 %394
      %396 = vrot.lane.b32.xlu0 %v333, 127
      %v397 = vpop.permute.xlu0 %396
      %v398 = vadd.f32 %v349, %v364
      %v399 = vadd.f32 %v348, %v363
      %v400 = vadd.f32 %v347, %v362
      %v401 = vadd.f32 %v346, %v361
      %v402 = vadd.f32 %v345, %v360
      %v403 = vadd.f32 %v344, %v359
      %v404 = vadd.f32 %v343, %v358
      %v405 = vadd.f32 %v342, %v365
      %v406 = vadd.f32 %v398, %v367
      %v407 = vadd.f32 %v399, %v369
      %v408 = vadd.f32 %v400, %v371
      %v409 = vadd.f32 %v401, %v373
      %v410 = vadd.f32 %v402, %v375
      %v411 = vadd.f32 %v403, %v377
      %v412 = vadd.f32 %v404, %v379
      %v413 = vadd.f32 %v405, %v381
      %v414 = vadd.f32 %v406, %v383
      %v415 = vadd.f32 %v407, %v385
      %v416 = vadd.f32 %v408, %v387
      %v417 = vadd.f32 %v409, %v389
      %v418 = vadd.f32 %v410, %v391
      %v419 = vadd.f32 %v411, %v393
      %v420 = vadd.f32 %v412, %v395
      %v421 = vadd.f32 %v413, %v397
      %v422 = vmul.f32 %v414, %v12
      %v423 = vmul.f32 %v415, %v13
      %v424 = vmul.f32 %v416, %v14
      %v425 = vmul.f32 %v417, %v15
      %v426 = vmul.f32 %v418, %v16
      %v427 = vmul.f32 %v419, %v17
      %v428 = vmul.f32 %v420, %v18
      %v429 = vmul.f32 %v421, %v19
    $region14: #{jacobi_machine_forward.1} parent=1 // loop_footer
      %s33 = sadd.s32 1, %s29
    $region15: #{jacobi_machine_forward.1} parent=1 // loop_footer_branch
      %28 = sbr.rel target = $region11
    $region16: #{jacobi_machine_forward.1} parent=1 // loop_exit
      _
    %430 = vst [vmem:[#allocation2] sm:$0xff] %v34
    %431 = vst [vmem:[#allocation2 + $0x8] sm:$0xff] %v35
    %432 = vst [vmem:[#allocation2 + $0x10] sm:$0xff] %v36
    %433 = vst [vmem:[#allocation2 + $0x18] sm:$0xff] %v37
    %434 = vst [vmem:[#allocation2 + $0x20] sm:$0xff] %v38
    %435 = vst [vmem:[#allocation2 + $0x28] sm:$0xff] %v39
    %436 = vst [vmem:[#allocation2 + $0x30] sm:$0xff] %v40
    %437 = vst [vmem:[#allocation2 + $0x38] sm:$0xff] %v41
    // Predicated region
    $region17: #{jacobi_machine_forward.1} parent=1 // pred_check
      _
    $region18: #{jacobi_machine_forward.1} parent=1 // pred_check_branch
      %439 = sbr.rel (0) target = $region20
    $region19: #{jacobi_machine_forward.1} parent=1 // pred_region
      %s441 = ssub.s32 1024, 1024
      %442 = vsyncadd [#allocation3], %s441
      %s443 = sshll.u32 [#allocation2], 4
      %s444 = int_to_ptr.vmem [resolvable:$true] %s443
      %449 = dma.vmem_to_hbm [thread:$0]  %s444, 1024, %s2, [#allocation3], 128, 128, 8
    $region20: #{jacobi_machine_forward.1} parent=1 // pred_fallthru
      _
    // Predicated region
    $region21: #{jacobi_machine_forward.1} parent=1 // pred_check
      _
    $region22: #{jacobi_machine_forward.1} parent=1 // pred_check_branch
      %451 = sbr.rel (0) target = $region24
    $region23: #{jacobi_machine_forward.1} parent=1 // pred_region
      %452 = dma.done [#allocation3], 1024
    $region24: #{jacobi_machine_forward.1} parent=1 // pred_fallthru
      _
    %453 = vsyncpa [#allocation3], 1

</llo_original>
